<compile_context>
chip_gen: v6e
topology: v6e:2x2x1
jax: 0.10.0
libtpu: 0.0.40
codegen_flags: <defaults>
</compile_context>

<pallas_src>
import jax
import jax.numpy as jnp
from jax.experimental import pallas as pl
from jax.experimental.pallas import tpu as pltpu

EPS = 1e-5  # PyTorch nn.LayerNorm default


def _round_up(x, m):
    return ((x + m - 1) // m) * m


def _vmem_capacity_bytes():
    """Per-core VMEM capacity; conservative (v7x-sized) fallback."""
    try:
        return int(pltpu.get_tpu_info().vmem_capacity_bytes)
    except Exception:
        return 64 * (1 << 20)


def _pick_tn(D, vmem_cap):
    """Largest divisor of D that is a multiple of 128 and <= the per-chip cap."""
    cap = 512 if vmem_cap <= (80 << 20) else 1024   # v7x vs v5e/v6e
    if D <= cap:
        return D
    for t in range(cap - (cap % 128), 127, -128):   # lane-dense, divides D
        if D % t == 0:
            return t
    for t in range(cap, 0, -1):                     # fallback: any divisor of D
        if D % t == 0:
            return t
    return D


def _pick_tm(M, D, vmem_cap):
    """Row-tile size: amortize per-step overhead but stay inside VMEM."""
    small = vmem_cap <= (80 << 20)                  # v7x-class (64 MiB) parts
    if D >= 8192:
        tm = 128 if small else 256
    elif D >= 2048:
        tm = 256 if small else 512
    else:
        tm = 512 if small else 1024
    return max(8, min(tm, _round_up(M, 8)))


def prenorm_residual_kernel(x_ref, gamma_ref, beta_ref, w_ref, b_ref, o_ref,
                            y_ref):
    # x_ref:     (tm, D)  rows (full feature dim, needed for LN reduction)
    # gamma_ref: (1, D)   LayerNorm weight (f32)
    # beta_ref:  (1, D)   LayerNorm bias (f32)
    # w_ref:     (D, tn)  Linear weight slice, already transposed, bf16
    # b_ref:     (1, tn)  Linear bias slice (f32)
    # o_ref:     (tm, tn) output tile
    # y_ref:     (tm, D)  bf16 scratch: normalized activations cached across j
    j = pl.program_id(1)
    tn = o_ref.shape[-1]

    # ---- LayerNorm: once per row tile, cached for every N tile --------------
    @pl.when(j == 0)
    def _():
        x = x_ref[...].astype(jnp.float32)
        mean = jnp.mean(x, axis=-1, keepdims=True)
        var = jnp.mean(x * x, axis=-1, keepdims=True) - mean * mean
        inv = jax.lax.rsqrt(var + EPS)
        y = (x - mean) * inv * gamma_ref[...].astype(jnp.float32) \
            + beta_ref[...].astype(jnp.float32)
        y_ref[...] = y.astype(jnp.bfloat16)

    # ---- Linear: bf16 MXU matmul, f32 accumulation ---------------------------
    acc = jnp.dot(y_ref[...], w_ref[...], preferred_element_type=jnp.float32)

    # ---- bias + residual (residual slice re-read from the resident x block) --
    n0 = j * tn
    if tn % 128 == 0:
        n0 = pl.multiple_of(n0, 128)
    x_res = x_ref[:, pl.ds(n0, tn)].astype(jnp.float32)

    o_ref[...] = (acc + b_ref[...].astype(jnp.float32) + x_res).astype(o_ref.dtype)


def prepare_prenorm_params(gamma, beta, w_t, b):
    """One-time parameter prep (keeps per-call HBM passes out of the hot path)."""
    D = gamma.shape[-1]
    return (gamma.reshape(1, D).astype(jnp.float32),
            beta.reshape(1, D).astype(jnp.float32),
            w_t.astype(jnp.bfloat16),          # bf16 weight for the MXU
            b.reshape(1, D).astype(jnp.float32))


def prenorm_residual(x, gamma2, beta2, w_bf16, b2, *, tm=None, tn=None):
    """x: (..., D). gamma2/beta2/b2: (1, D) f32. w_bf16: (D, D) = W.T in bf16."""
    D = x.shape[-1]
    M = x.size // D

    vmem_cap = _vmem_capacity_bytes()
    if tn is None:
        tn = _pick_tn(D, vmem_cap)
    assert D % tn == 0, (D, tn)
    if tm is None:
        tm = _pick_tm(M, D, vmem_cap)
    tm = max(8, _round_up(tm, 8))

    x2 = x.reshape(M, D)
    grid = (pl.cdiv(M, tm), D // tn)   # ragged last row block handled by Pallas

    # VMEM budget: double-buffered x/out/W tiles + bf16 scratch + f32 LN temps.
    est = (2 * tm * D * x2.dtype.itemsize        # x tiles
           + tm * D * 2                          # bf16 normalized-act scratch
           + 3 * tm * D * 4                      # f32 LN temporaries headroom
           + 2 * tm * tn * x2.dtype.itemsize     # out tiles
           + 2 * D * tn * 2                      # bf16 weight tiles
           + 3 * 2 * D * 4)                      # gamma/beta/bias
    chip_cap = min(100 << 20, max(32 << 20, vmem_cap - (8 << 20)))
    vmem_limit = int(min(chip_cap, max(32 << 20, int(est * 1.25))))

    out = pl.pallas_call(
        prenorm_residual_kernel,
        out_shape=jax.ShapeDtypeStruct((M, D), x.dtype),
        grid_spec=pltpu.PrefetchScalarGridSpec(
            num_scalar_prefetch=0,
            grid=grid,
            in_specs=[
                pl.BlockSpec((tm, D), lambda i, j: (i, 0)),    # x rows (full D)
                pl.BlockSpec((1, D), lambda i, j: (0, 0)),     # gamma
                pl.BlockSpec((1, D), lambda i, j: (0, 0)),     # beta
                pl.BlockSpec((D, tn), lambda i, j: (0, j)),    # W.T (bf16)
                pl.BlockSpec((1, tn), lambda i, j: (0, j)),    # bias
            ],
            out_specs=pl.BlockSpec((tm, tn), lambda i, j: (i, j)),
            scratch_shapes=[pltpu.VMEM((tm, D), jnp.bfloat16)],
        ),
        compiler_params=pltpu.CompilerParams(
            # j carries the LN scratch across N tiles -> must be "arbitrary";
            # i stays "parallel" for megacore sharding.
            dimension_semantics=("parallel", "arbitrary"),
            vmem_limit_bytes=vmem_limit),
    )(x2, gamma2, beta2, w_bf16, b2)

    return out.reshape(x.shape)


if __name__ == "__main__":
    # Lane-dense feature dim (multiple of 128), small overall problem.
    B, S, D = 2, 64, 256

    key = jax.random.PRNGKey(0)
    kx, kw, kb = jax.random.split(key, 3)

    x = jax.random.normal(kx, (B, S, D), dtype=jnp.float32)

    # Deterministic synthetic parameters (PyTorch LayerNorm defaults: ones/zeros).
    gamma = jnp.ones((D,), dtype=jnp.float32)
    beta = jnp.zeros((D,), dtype=jnp.float32)
    w = jax.random.normal(kw, (D, D), dtype=jnp.float32) * (1.0 / jnp.sqrt(D))
    b = jax.random.normal(kb, (D,), dtype=jnp.float32) * 0.01
    w_t = w.T  # rows @ w_t == rows @ W.T (PyTorch Linear convention)

    params = prepare_prenorm_params(gamma, beta, w_t, b)   # one-time prep
    fwd = jax.jit(prenorm_residual)

    out = jax.block_until_ready(fwd(x, *params))

    # Pure-JAX reference (bf16 matmul to mirror the kernel's MXU path).
    xf = x.astype(jnp.float32)
    mean = jnp.mean(xf, axis=-1, keepdims=True)
    var = jnp.mean((xf - mean) ** 2, axis=-1, keepdims=True)
    y = (xf - mean) * jax.lax.rsqrt(var + EPS) * gamma + beta
    lin = jnp.einsum("bsd,de->bse",
                     y.astype(jnp.bfloat16), w_t.astype(jnp.bfloat16),
                     preferred_element_type=jnp.float32)
    ref = lin + b + xf

    assert jnp.allclose(out, ref, atol=5e-3, rtol=5e-3), (
        float(jnp.max(jnp.abs(out - ref))))
    print("KERNEL_OK")
</pallas_src>

<mosaic_0001>
module attributes {stable_mosaic.version = 11 : i64} {
  func.func @prenorm_residual_kernel(%arg0: i32, %arg1: i32, %arg2: memref<128x256xf32, #tpu.memory_space<vmem>>, %arg3: memref<1x256xf32, #tpu.memory_space<vmem>>, %arg4: memref<1x256xf32, #tpu.memory_space<vmem>>, %arg5: memref<256x256xbf16, #tpu.memory_space<vmem>>, %arg6: memref<1x256xf32, #tpu.memory_space<vmem>>, %arg7: memref<128x256xf32, #tpu.memory_space<vmem>>, %arg8: memref<128x256xbf16, #tpu.memory_space<vmem>>) attributes {dimension_semantics = [#tpu.dimension_semantics<parallel>, #tpu.dimension_semantics<arbitrary>], iteration_bounds = array<i64: 1, 1>, scalar_prefetch = 0 : i64, scratch_operands = 1 : i64, tpu.core_type = #tpu.core_type<tc>, window_params = [{transform_indices = @transform_0, window_bounds = array<i64: 128, 256>}, {pipeline_mode = #tpu.pipeline_mode<synchronous>, transform_indices = @transform_1, window_bounds = array<i64: 1, 256>}, {pipeline_mode = #tpu.pipeline_mode<synchronous>, transform_indices = @transform_2, window_bounds = array<i64: 1, 256>}, {transform_indices = @transform_3, window_bounds = array<i64: 256, 256>}, {transform_indices = @transform_4, window_bounds = array<i64: 1, 256>}, {transform_indices = @transform_5, window_bounds = array<i64: 128, 256>}]} {
    %c0_i32 = arith.constant 0 : i32
    %0 = arith.cmpi eq, %arg1, %c0_i32 : i32
    %1 = arith.extui %0 : i1 to i32
    %c0_i32_0 = arith.constant 0 : i32
    %2 = arith.cmpi ne, %1, %c0_i32_0 : i32
    scf.if %2 {
      %c0_9 = arith.constant 0 : index
      %c0_10 = arith.constant 0 : index
      %15 = vector.load %arg2[%c0_9, %c0_10] : memref<128x256xf32, #tpu.memory_space<vmem>>, vector<128x256xf32>
      %cst_11 = arith.constant dense<0.000000e+00> : vector<128xf32>
      %16 = vector.multi_reduction <add>, %15, %cst_11 [1] : vector<128x256xf32> to vector<128xf32>
      %17 = vector.shape_cast %16 : vector<128xf32> to vector<128x1xf32>
      %cst_12 = arith.constant 2.560000e+02 : f32
      %18 = vector.broadcast %cst_12 : f32 to vector<128x1xf32>
      %19 = arith.divf %17, %18 : vector<128x1xf32>
      %20 = arith.mulf %15, %15 : vector<128x256xf32>
      %cst_13 = arith.constant dense<0.000000e+00> : vector<128xf32>
      %21 = vector.multi_reduction <add>, %20, %cst_13 [1] : vector<128x256xf32> to vector<128xf32>
      %22 = vector.shape_cast %21 : vector<128xf32> to vector<128x1xf32>
      %cst_14 = arith.constant 2.560000e+02 : f32
      %23 = vector.broadcast %cst_14 : f32 to vector<128x1xf32>
      %24 = arith.divf %22, %23 : vector<128x1xf32>
      %25 = arith.mulf %19, %19 : vector<128x1xf32>
      %26 = arith.subf %24, %25 : vector<128x1xf32>
      %cst_15 = arith.constant 9.99999974E-6 : f32
      %27 = vector.broadcast %cst_15 : f32 to vector<128x1xf32>
      %28 = arith.addf %26, %27 : vector<128x1xf32>
      %29 = math.rsqrt %28 : vector<128x1xf32>
      %30 = vector.broadcast %19 : vector<128x1xf32> to vector<128x256xf32>
      %31 = arith.subf %15, %30 : vector<128x256xf32>
      %32 = vector.broadcast %29 : vector<128x1xf32> to vector<128x256xf32>
      %33 = arith.mulf %31, %32 : vector<128x256xf32>
      %c0_16 = arith.constant 0 : index
      %c0_17 = arith.constant 0 : index
      %34 = vector.load %arg3[%c0_16, %c0_17] : memref<1x256xf32, #tpu.memory_space<vmem>>, vector<1x256xf32>
      %35 = vector.broadcast %34 : vector<1x256xf32> to vector<128x256xf32>
      %36 = arith.mulf %33, %35 : vector<128x256xf32>
      %c0_18 = arith.constant 0 : index
      %c0_19 = arith.constant 0 : index
      %37 = vector.load %arg4[%c0_18, %c0_19] : memref<1x256xf32, #tpu.memory_space<vmem>>, vector<1x256xf32>
      %38 = vector.broadcast %37 : vector<1x256xf32> to vector<128x256xf32>
      %39 = arith.addf %36, %38 : vector<128x256xf32>
      %40 = arith.truncf %39 : vector<128x256xf32> to vector<128x256xbf16>
      %c0_20 = arith.constant 0 : index
      %c0_21 = arith.constant 0 : index
      %41 = vector.load %arg8[%c0_20, %c0_21] : memref<128x256xbf16, #tpu.memory_space<vmem>>, vector<128x256xbf16>
      tpu.vector_store %arg8[%c0_20, %c0_21], %40 {strides = array<i32>} : memref<128x256xbf16, #tpu.memory_space<vmem>>, vector<128x256xbf16>,
    } else {
    }
    %c0 = arith.constant 0 : index
    %c0_1 = arith.constant 0 : index
    %3 = vector.load %arg8[%c0, %c0_1] : memref<128x256xbf16, #tpu.memory_space<vmem>>, vector<128x256xbf16>
    %c0_2 = arith.constant 0 : index
    %c0_3 = arith.constant 0 : index
    %4 = vector.load %arg5[%c0_2, %c0_3] : memref<256x256xbf16, #tpu.memory_space<vmem>>, vector<256x256xbf16>
    %cst = arith.constant dense<0.000000e+00> : vector<128x256xf32>
    %5 = tpu.matmul %3, %4, %cst {dimension_numbers = #tpu.dot_dimension_numbers<[1], [0], [0], [1], [0, 0, 1, 1], [], []>} : vector<128x256xbf16>, vector<256x256xbf16>, vector<128x256xf32> -> vector<128x256xf32>
    %c256_i32 = arith.constant 256 : i32
    %6 = arith.muli %arg1, %c256_i32 : i32
    %7 = tpu.assume_multiple %6, 128 : i32
    %c0_4 = arith.constant 0 : index
    %8 = arith.index_cast %7 : i32 to index
    %9 = vector.load %arg2[%c0_4, %8] : memref<128x256xf32, #tpu.memory_space<vmem>>, vector<128x256xf32>
    %c0_5 = arith.constant 0 : index
    %c0_6 = arith.constant 0 : index
    %10 = vector.load %arg6[%c0_5, %c0_6] : memref<1x256xf32, #tpu.memory_space<vmem>>, vector<1x256xf32>
    %11 = vector.broadcast %10 : vector<1x256xf32> to vector<128x256xf32>
    %12 = arith.addf %5, %11 : vector<128x256xf32>
    %13 = arith.addf %12, %9 : vector<128x256xf32>
    %c0_7 = arith.constant 0 : index
    %c0_8 = arith.constant 0 : index
    %14 = vector.load %arg7[%c0_7, %c0_8] : memref<128x256xf32, #tpu.memory_space<vmem>>, vector<128x256xf32>
    tpu.vector_store %arg7[%c0_7, %c0_8], %13 {strides = array<i32>} : memref<128x256xf32, #tpu.memory_space<vmem>>, vector<128x256xf32>,
    return
  }
  func.func @transform_0(%arg0: i32, %arg1: i32) -> (i32, i32) {
    %c0_i32 = arith.constant 0 : i32
    %c0_i32_0 = arith.constant 0 : i32
    return %arg0, %c0_i32 : i32, i32
  }
  func.func @transform_1(%arg0: i32, %arg1: i32) -> (i32, i32) {
    %c0_i32 = arith.constant 0 : i32
    %c0_i32_0 = arith.constant 0 : i32
    %c0_i32_1 = arith.constant 0 : i32
    return %c0_i32, %c0_i32_0 : i32, i32
  }
  func.func @transform_2(%arg0: i32, %arg1: i32) -> (i32, i32) {
    %c0_i32 = arith.constant 0 : i32
    %c0_i32_0 = arith.constant 0 : i32
    %c0_i32_1 = arith.constant 0 : i32
    return %c0_i32, %c0_i32_0 : i32, i32
  }
  func.func @transform_3(%arg0: i32, %arg1: i32) -> (i32, i32) {
    %c0_i32 = arith.constant 0 : i32
    %c0_i32_0 = arith.constant 0 : i32
    return %c0_i32, %arg1 : i32, i32
  }
  func.func @transform_4(%arg0: i32, %arg1: i32) -> (i32, i32) {
    %c0_i32 = arith.constant 0 : i32
    %c0_i32_0 = arith.constant 0 : i32
    return %c0_i32, %arg1 : i32, i32
  }
  func.func @transform_5(%arg0: i32, %arg1: i32) -> (i32, i32) {
    %c0_i32 = arith.constant 0 : i32
    return %arg0, %arg1 : i32, i32
  }
}

</mosaic_0001>

<llo_original>
// kernel: prenorm_residual.1
$region0: #{prenorm_residual.1}
  #allocation0 [shape = 'u32[]', space=smem, size = 0x4, offset = 0x4, fixed_abs, tag = 'smem constant byte address 0x4 - core index']
  #allocation1 [shape = 'u32[144,128]{1,0:T(1,128)}', space=vmem, size = 0x12000, scoped, tag = 'internal scratch']
  #allocation2 [shape = 'bf16[128,256]{1,0:T(8,128)(2,1)}', space=vmem, size = 0x10000, scoped, tag = 'scratch operand']
  %s0 = inlined_call_operand.hbm [shape: f32[128,256], index: 0, kind: input, shape index: {}]
  %s1 = inlined_call_operand.vmem [shape: f32[1,256], index: 1, kind: input, shape index: {}]
  %s2 = inlined_call_operand.vmem [shape: f32[1,256], index: 2, kind: input, shape index: {}]
  %s3 = inlined_call_operand.hbm [shape: bf16[256,256], index: 3, kind: input, shape index: {}]
  %s4 = inlined_call_operand.vmem [shape: f32[1,256], index: 4, kind: input, shape index: {}]
  %s5 = inlined_call_operand.hbm [shape: f32[128,256], index: 5, kind: output, shape index: {}]
  %s6 = sld [smem:[#allocation0]]
  $region42: #{prenorm_residual.1} parent=0
    _
  %s8 = ssub.s32 1, %s6
  %s9 = scalar_select 0, %s8, %s6
  $region1: #{prenorm_residual.1} parent=0
    #allocation3 [shape = 'u8[131072]{0}', space=vmem, size = 0x20000, scoped, tag = 'input window, operand 0, single buffered']
    #allocation4 [shape = 's32[1]{0}', space=sflag, size = 0x4, scoped, tag = 'scoped memory for prenorm_residual.1']
    #allocation5 [shape = 's32[1]{0}', space=sflag, size = 0x4, scoped, tag = 'scoped memory for prenorm_residual.1']
    #allocation6 [shape = 'u8[131072]{0}', space=vmem, size = 0x20000, scoped, tag = 'input window, operand 3, single buffered']
    #allocation7 [shape = 's32[1]{0}', space=sflag, size = 0x4, scoped, tag = 'scoped memory for prenorm_residual.1']
    #allocation8 [shape = 'u8[131072]{0}', space=vmem, size = 0x20000, scoped, tag = 'output window, operand 0, single buffered']
    %10 = vsyncpa [#allocation4], 0
    %11 = vsyncpa [#allocation7], 0
    %12 = vsyncpa [#allocation5], 0
    // Predicated region
    $region2: #{prenorm_residual.1} parent=1 // pred_check
      _
    $region3: #{prenorm_residual.1} parent=1 // pred_check_branch
      %14 = sbr.rel (0) target = $region5
    $region4: #{prenorm_residual.1} parent=1 // pred_region
      %s16 = ssub.s32 4096, 4096
      %17 = vsyncadd [#allocation4], %s16
      %s18 = sshll.u32 [#allocation3], 4
      %s19 = int_to_ptr.vmem [resolvable:$true] %s18
      %24 = dma.hbm_to_vmem [thread:$0]  %s0, 4096, %s19, [#allocation4], 256, 256, 16
    $region5: #{prenorm_residual.1} parent=1 // pred_fallthru
      _
    // Predicated region
    $region6: #{prenorm_residual.1} parent=1 // pred_check
      _
    $region7: #{prenorm_residual.1} parent=1 // pred_check_branch
      %26 = sbr.rel (0) target = $region9
    $region8: #{prenorm_residual.1} parent=1 // pred_region
      _
    $region9: #{prenorm_residual.1} parent=1 // pred_fallthru
      _
    // Predicated region
    $region10: #{prenorm_residual.1} parent=1 // pred_check
      _
    $region11: #{prenorm_residual.1} parent=1 // pred_check_branch
      %28 = sbr.rel (0) target = $region13
    $region12: #{prenorm_residual.1} parent=1 // pred_region
      _
    $region13: #{prenorm_residual.1} parent=1 // pred_fallthru
      _
    // Predicated region
    $region14: #{prenorm_residual.1} parent=1 // pred_check
      _
    $region15: #{prenorm_residual.1} parent=1 // pred_check_branch
      %30 = sbr.rel (0) target = $region17
    $region16: #{prenorm_residual.1} parent=1 // pred_region
      %s32 = ssub.s32 4096, 4096
      %33 = vsyncadd [#allocation7], %s32
      %s34 = sshll.u32 [#allocation6], 4
      %s35 = int_to_ptr.vmem [resolvable:$true] %s34
      %40 = dma.hbm_to_vmem [thread:$0]  %s3, 4096, %s35, [#allocation7], 128, 128, 8
    $region17: #{prenorm_residual.1} parent=1 // pred_fallthru
      _
    // Predicated region
    $region18: #{prenorm_residual.1} parent=1 // pred_check
      _
    $region19: #{prenorm_residual.1} parent=1 // pred_check_branch
      %42 = sbr.rel (0) target = $region21
    $region20: #{prenorm_residual.1} parent=1 // pred_region
      _
    $region21: #{prenorm_residual.1} parent=1 // pred_fallthru
      _
    // Predicated region
    $region22: #{prenorm_residual.1} parent=1 // pred_check
      _
    $region23: #{prenorm_residual.1} parent=1 // pred_check_branch
      %44 = sbr.rel (0) target = $region25
    $region24: #{prenorm_residual.1} parent=1 // pred_region
      %45 = dma.done [#allocation4], 4096
    $region25: #{prenorm_residual.1} parent=1 // pred_fallthru
      _
    // Predicated region
    $region26: #{prenorm_residual.1} parent=1 // pred_check
      _
    $region27: #{prenorm_residual.1} parent=1 // pred_check_branch
      %47 = sbr.rel (0) target = $region29
    $region28: #{prenorm_residual.1} parent=1 // pred_region
      %48 = dma.done [#allocation7], 4096
    $region29: #{prenorm_residual.1} parent=1 // pred_fallthru
      _
    %p49 = scmp.eq.s32.totalorder 0, 0
    // Predicated region
    $region30: #{prenorm_residual.1} parent=1 // pred_check
      %p50 = pneg %p49
    $region31: #{prenorm_residual.1} parent=1 // pred_check_branch
      %52 = sbr.rel (%p50) target = $region33
    $region32: #{prenorm_residual.1} parent=1 // pred_region
      %v53 = vld [vmem:[#allocation3] sm:$0xff]
      %v54 = vld [vmem:[#allocation3 + $0x8] sm:$0xff]
      %v55 = vld [vmem:[#allocation3 + $0x10] sm:$0xff]
      %v56 = vld [vmem:[#allocation3 + $0x18] sm:$0xff]
      %v57 = vld [vmem:[#allocation3 + $0x20] sm:$0xff]
      %v58 = vld [vmem:[#allocation3 + $0x28] sm:$0xff]
      %v59 = vld [vmem:[#allocation3 + $0x30] sm:$0xff]
      %v60 = vld [vmem:[#allocation3 + $0x38] sm:$0xff]
      %v61 = vld [vmem:[#allocation3 + $0x40] sm:$0xff]
      %v62 = vld [vmem:[#allocation3 + $0x48] sm:$0xff]
      %v63 = vld [vmem:[#allocation3 + $0x50] sm:$0xff]
      %v64 = vld [vmem:[#allocation3 + $0x58] sm:$0xff]
      %v65 = vld [vmem:[#allocation3 + $0x60] sm:$0xff]
      %v66 = vld [vmem:[#allocation3 + $0x68] sm:$0xff]
      %v67 = vld [vmem:[#allocation3 + $0x70] sm:$0xff]
      %v68 = vld [vmem:[#allocation3 + $0x78] sm:$0xff]
      %v69 = vld [vmem:[#allocation3 + $0x80] sm:$0xff]
      %v70 = vld [vmem:[#allocation3 + $0x88] sm:$0xff]
      %v71 = vld [vmem:[#allocation3 + $0x90] sm:$0xff]
      %v72 = vld [vmem:[#allocation3 + $0x98] sm:$0xff]
      %v73 = vld [vmem:[#allocation3 + $0xa0] sm:$0xff]
      %v74 = vld [vmem:[#allocation3 + $0xa8] sm:$0xff]
      %v75 = vld [vmem:[#allocation3 + $0xb0] sm:$0xff]
      %v76 = vld [vmem:[#allocation3 + $0xb8] sm:$0xff]
      %v77 = vld [vmem:[#allocation3 + $0xc0] sm:$0xff]
      %v78 = vld [vmem:[#allocation3 + $0xc8] sm:$0xff]
      %v79 = vld [vmem:[#allocation3 + $0xd0] sm:$0xff]
      %v80 = vld [vmem:[#allocation3 + $0xd8] sm:$0xff]
      %v81 = vld [vmem:[#allocation3 + $0xe0] sm:$0xff]
      %v82 = vld [vmem:[#allocation3 + $0xe8] sm:$0xff]
      %v83 = vld [vmem:[#allocation3 + $0xf0] sm:$0xff]
      %v84 = vld [vmem:[#allocation3 + $0xf8] sm:$0xff]
      %v85 = vadd.f32 %v53, %v54
      %86 = vadd.xlane.f32.xlu0 %v85
      %v87 = vpop.xlane.xlu0 %86
      %v88 = vadd.f32 %v55, %v56
      %89 = vadd.xlane.f32.xlu0 %v88
      %v90 = vpop.xlane.xlu0 %89
      %v91 = vadd.f32 %v57, %v58
      %92 = vadd.xlane.f32.xlu0 %v91
      %v93 = vpop.xlane.xlu0 %92
      %v94 = vadd.f32 %v59, %v60
      %95 = vadd.xlane.f32.xlu0 %v94
      %v96 = vpop.xlane.xlu0 %95
      %v97 = vadd.f32 %v61, %v62
      %98 = vadd.xlane.f32.xlu0 %v97
      %v99 = vpop.xlane.xlu0 %98
      %v100 = vadd.f32 %v63, %v64
      %101 = vadd.xlane.f32.xlu0 %v100
      %v102 = vpop.xlane.xlu0 %101
      %v103 = vadd.f32 %v65, %v66
      %104 = vadd.xlane.f32.xlu0 %v103
      %v105 = vpop.xlane.xlu0 %104
      %v106 = vadd.f32 %v67, %v68
      %107 = vadd.xlane.f32.xlu0 %v106
      %v108 = vpop.xlane.xlu0 %107
      %v109 = vadd.f32 %v69, %v70
      %110 = vadd.xlane.f32.xlu0 %v109
      %v111 = vpop.xlane.xlu0 %110
      %v112 = vadd.f32 %v71, %v72
      %113 = vadd.xlane.f32.xlu0 %v112
      %v114 = vpop.xlane.xlu0 %113
      %v115 = vadd.f32 %v73, %v74
      %116 = vadd.xlane.f32.xlu0 %v115
      %v117 = vpop.xlane.xlu0 %116
      %v118 = vadd.f32 %v75, %v76
      %119 = vadd.xlane.f32.xlu0 %v118
      %v120 = vpop.xlane.xlu0 %119
      %v121 = vadd.f32 %v77, %v78
      %122 = vadd.xlane.f32.xlu0 %v121
      %v123 = vpop.xlane.xlu0 %122
      %v124 = vadd.f32 %v79, %v80
      %125 = vadd.xlane.f32.xlu0 %v124
      %v126 = vpop.xlane.xlu0 %125
      %v127 = vadd.f32 %v81, %v82
      %128 = vadd.xlane.f32.xlu0 %v127
      %v129 = vpop.xlane.xlu0 %128
      %v130 = vadd.f32 %v83, %v84
      %131 = vadd.xlane.f32.xlu0 %v130
      %v132 = vpop.xlane.xlu0 %131
      %v133 = vrcp.pop 256.0
      %v134 = vmul.f32 %v87, %v133
      %v135 = vmul.f32 %v90, %v133
      %v136 = vmul.f32 %v93, %v133
      %v137 = vmul.f32 %v96, %v133
      %v138 = vmul.f32 %v99, %v133
      %v139 = vmul.f32 %v102, %v133
      %v140 = vmul.f32 %v105, %v133
      %v141 = vmul.f32 %v108, %v133
      %v142 = vmul.f32 %v111, %v133
      %v143 = vmul.f32 %v114, %v133
      %v144 = vmul.f32 %v117, %v133
      %v145 = vmul.f32 %v120, %v133
      %v146 = vmul.f32 %v123, %v133
      %v147 = vmul.f32 %v126, %v133
      %v148 = vmul.f32 %v129, %v133
      %v149 = vmul.f32 %v132, %v133
      %v150 = vmul.f32 %v53, %v53
      %v151 = vmul.f32 %v54, %v54
      %v152 = vmul.f32 %v55, %v55
      %v153 = vmul.f32 %v56, %v56
      %v154 = vmul.f32 %v57, %v57
      %v155 = vmul.f32 %v58, %v58
      %v156 = vmul.f32 %v59, %v59
      %v157 = vmul.f32 %v60, %v60
      %v158 = vmul.f32 %v61, %v61
      %v159 = vmul.f32 %v62, %v62
      %v160 = vmul.f32 %v63, %v63
      %v161 = vmul.f32 %v64, %v64
      %v162 = vmul.f32 %v65, %v65
      %v163 = vmul.f32 %v66, %v66
      %v164 = vmul.f32 %v67, %v67
      %v165 = vmul.f32 %v68, %v68
      %v166 = vmul.f32 %v69, %v69
      %v167 = vmul.f32 %v70, %v70
      %v168 = vmul.f32 %v71, %v71
      %v169 = vmul.f32 %v72, %v72
      %v170 = vmul.f32 %v73, %v73
      %v171 = vmul.f32 %v74, %v74
      %v172 = vmul.f32 %v75, %v75
      %v173 = vmul.f32 %v76, %v76
      %v174 = vmul.f32 %v77, %v77
      %v175 = vmul.f32 %v78, %v78
      %v176 = vmul.f32 %v79, %v79
      %v177 = vmul.f32 %v80, %v80
      %v178 = vmul.f32 %v81, %v81
      %v179 = vmul.f32 %v82, %v82
      %v180 = vmul.f32 %v83, %v83
      %v181 = vmul.f32 %v84, %v84
      %v182 = vadd.f32 %v150, %v151
      %183 = vadd.xlane.f32.xlu0 %v182
      %v184 = vpop.xlane.xlu0 %183
      %v185 = vadd.f32 %v152, %v153
      %186 = vadd.xlane.f32.xlu0 %v185
      %v187 = vpop.xlane.xlu0 %186
      %v188 = vadd.f32 %v154, %v155
      %189 = vadd.xlane.f32.xlu0 %v188
      %v190 = vpop.xlane.xlu0 %189
      %v191 = vadd.f32 %v156, %v157
      %192 = vadd.xlane.f32.xlu0 %v191
      %v193 = vpop.xlane.xlu0 %192
      %v194 = vadd.f32 %v158, %v159
      %195 = vadd.xlane.f32.xlu0 %v194
      %v196 = vpop.xlane.xlu0 %195
      %v197 = vadd.f32 %v160, %v161
      %198 = vadd.xlane.f32.xlu0 %v197
      %v199 = vpop.xlane.xlu0 %198
      %v200 = vadd.f32 %v162, %v163
      %201 = vadd.xlane.f32.xlu0 %v200
      %v202 = vpop.xlane.xlu0 %201
      %v203 = vadd.f32 %v164, %v165
      %204 = vadd.xlane.f32.xlu0 %v203
      %v205 = vpop.xlane.xlu0 %204
      %v206 = vadd.f32 %v166, %v167
      %207 = vadd.xlane.f32.xlu0 %v206
      %v208 = vpop.xlane.xlu0 %207
      %v209 = vadd.f32 %v168, %v169
      %210 = vadd.xlane.f32.xlu0 %v209
      %v211 = vpop.xlane.xlu0 %210
      %v212 = vadd.f32 %v170, %v171
      %213 = vadd.xlane.f32.xlu0 %v212
      %v214 = vpop.xlane.xlu0 %213
      %v215 = vadd.f32 %v172, %v173
      %216 = vadd.xlane.f32.xlu0 %v215
      %v217 = vpop.xlane.xlu0 %216
      %v218 = vadd.f32 %v174, %v175
      %219 = vadd.xlane.f32.xlu0 %v218
      %v220 = vpop.xlane.xlu0 %219
      %v221 = vadd.f32 %v176, %v177
      %222 = vadd.xlane.f32.xlu0 %v221
      %v223 = vpop.xlane.xlu0 %222
      %v224 = vadd.f32 %v178, %v179
      %225 = vadd.xlane.f32.xlu0 %v224
      %v226 = vpop.xlane.xlu0 %225
      %v227 = vadd.f32 %v180, %v181
      %228 = vadd.xlane.f32.xlu0 %v227
      %v229 = vpop.xlane.xlu0 %228
      %v230 = vmul.f32 %v184, %v133
      %v231 = vmul.f32 %v187, %v133
      %v232 = vmul.f32 %v190, %v133
      %v233 = vmul.f32 %v193, %v133
      %v234 = vmul.f32 %v196, %v133
      %v235 = vmul.f32 %v199, %v133
      %v236 = vmul.f32 %v202, %v133
      %v237 = vmul.f32 %v205, %v133
      %v238 = vmul.f32 %v208, %v133
      %v239 = vmul.f32 %v211, %v133
      %v240 = vmul.f32 %v214, %v133
      %v241 = vmul.f32 %v217, %v133
      %v242 = vmul.f32 %v220, %v133
      %v243 = vmul.f32 %v223, %v133
      %v244 = vmul.f32 %v226, %v133
      %v245 = vmul.f32 %v229, %v133
      %v246 = vmul.f32 %v134, %v134
      %v247 = vmul.f32 %v135, %v135
      %v248 = vmul.f32 %v136, %v136
      %v249 = vmul.f32 %v137, %v137
      %v250 = vmul.f32 %v138, %v138
      %v251 = vmul.f32 %v139, %v139
      %v252 = vmul.f32 %v140, %v140
      %v253 = vmul.f32 %v141, %v141
      %v254 = vmul.f32 %v142, %v142
      %v255 = vmul.f32 %v143, %v143
      %v256 = vmul.f32 %v144, %v144
      %v257 = vmul.f32 %v145, %v145
      %v258 = vmul.f32 %v146, %v146
      %v259 = vmul.f32 %v147, %v147
      %v260 = vmul.f32 %v148, %v148
      %v261 = vmul.f32 %v149, %v149
      %v262 = vsub.f32 %v230, %v246
      %v263 = vsub.f32 %v231, %v247
      %v264 = vsub.f32 %v232, %v248
      %v265 = vsub.f32 %v233, %v249
      %v266 = vsub.f32 %v234, %v250
      %v267 = vsub.f32 %v235, %v251
      %v268 = vsub.f32 %v236, %v252
      %v269 = vsub.f32 %v237, %v253
      %v270 = vsub.f32 %v238, %v254
      %v271 = vsub.f32 %v239, %v255
      %v272 = vsub.f32 %v240, %v256
      %v273 = vsub.f32 %v241, %v257
      %v274 = vsub.f32 %v242, %v258
      %v275 = vsub.f32 %v243, %v259
      %v276 = vsub.f32 %v244, %v260
      %v277 = vsub.f32 %v245, %v261
      %v278 = vadd.f32 %v262, 1e-05
      %v279 = vadd.f32 %v263, 1e-05
      %v280 = vadd.f32 %v264, 1e-05
      %v281 = vadd.f32 %v265, 1e-05
      %v282 = vadd.f32 %v266, 1e-05
      %v283 = vadd.f32 %v267, 1e-05
      %v284 = vadd.f32 %v268, 1e-05
      %v285 = vadd.f32 %v269, 1e-05
      %v286 = vadd.f32 %v270, 1e-05
      %v287 = vadd.f32 %v271, 1e-05
      %v288 = vadd.f32 %v272, 1e-05
      %v289 = vadd.f32 %v273, 1e-05
      %v290 = vadd.f32 %v274, 1e-05
      %v291 = vadd.f32 %v275, 1e-05
      %v292 = vadd.f32 %v276, 1e-05
      %v293 = vadd.f32 %v277, 1e-05
      %v294 = vrsqrt.pop %v278
      %v295 = vrsqrt.pop %v279
      %v296 = vrsqrt.pop %v280
      %v297 = vrsqrt.pop %v281
      %v298 = vrsqrt.pop %v282
      %v299 = vrsqrt.pop %v283
      %v300 = vrsqrt.pop %v284
      %v301 = vrsqrt.pop %v285
      %v302 = vrsqrt.pop %v286
      %v303 = vrsqrt.pop %v287
      %v304 = vrsqrt.pop %v288
      %v305 = vrsqrt.pop %v289
      %v306 = vrsqrt.pop %v290
      %v307 = vrsqrt.pop %v291
      %v308 = vrsqrt.pop %v292
      %v309 = vrsqrt.pop %v293
      %v310 = vsub.f32 %v53, %v134
      %v311 = vsub.f32 %v54, %v134
      %v312 = vsub.f32 %v55, %v135
      %v313 = vsub.f32 %v56, %v135
      %v314 = vsub.f32 %v57, %v136
      %v315 = vsub.f32 %v58, %v136
      %v316 = vsub.f32 %v59, %v137
      %v317 = vsub.f32 %v60, %v137
      %v318 = vsub.f32 %v61, %v138
      %v319 = vsub.f32 %v62, %v138
      %v320 = vsub.f32 %v63, %v139
      %v321 = vsub.f32 %v64, %v139
      %v322 = vsub.f32 %v65, %v140
      %v323 = vsub.f32 %v66, %v140
      %v324 = vsub.f32 %v67, %v141
      %v325 = vsub.f32 %v68, %v141
      %v326 = vsub.f32 %v69, %v142
      %v327 = vsub.f32 %v70, %v142
      %v328 = vsub.f32 %v71, %v143
      %v329 = vsub.f32 %v72, %v143
      %v330 = vsub.f32 %v73, %v144
      %v331 = vsub.f32 %v74, %v144
      %v332 = vsub.f32 %v75, %v145
      %v333 = vsub.f32 %v76, %v145
      %v334 = vsub.f32 %v77, %v146
      %v335 = vsub.f32 %v78, %v146
      %v336 = vsub.f32 %v79, %v147
      %v337 = vsub.f32 %v80, %v147
      %v338 = vsub.f32 %v81, %v148
      %v339 = vsub.f32 %v82, %v148
      %v340 = vsub.f32 %v83, %v149
      %v341 = vsub.f32 %v84, %v149
      %v342 = vmul.f32 %v310, %v294
      %v343 = vmul.f32 %v311, %v294
      %v344 = vmul.f32 %v312, %v295
      %v345 = vmul.f32 %v313, %v295
      %v346 = vmul.f32 %v314, %v296
      %v347 = vmul.f32 %v315, %v296
      %v348 = vmul.f32 %v316, %v297
      %v349 = vmul.f32 %v317, %v297
      %v350 = vmul.f32 %v318, %v298
      %v351 = vmul.f32 %v319, %v298
      %v352 = vmul.f32 %v320, %v299
      %v353 = vmul.f32 %v321, %v299
      %v354 = vmul.f32 %v322, %v300
      %v355 = vmul.f32 %v323, %v300
      %v356 = vmul.f32 %v324, %v301
      %v357 = vmul.f32 %v325, %v301
      %v358 = vmul.f32 %v326, %v302
      %v359 = vmul.f32 %v327, %v302
      %v360 = vmul.f32 %v328, %v303
      %v361 = vmul.f32 %v329, %v303
      %v362 = vmul.f32 %v330, %v304
      %v363 = vmul.f32 %v331, %v304
      %v364 = vmul.f32 %v332, %v305
      %v365 = vmul.f32 %v333, %v305
      %v366 = vmul.f32 %v334, %v306
      %v367 = vmul.f32 %v335, %v306
      %v368 = vmul.f32 %v336, %v307
      %v369 = vmul.f32 %v337, %v307
      %v370 = vmul.f32 %v338, %v308
      %v371 = vmul.f32 %v339, %v308
      %v372 = vmul.f32 %v340, %v309
      %v373 = vmul.f32 %v341, %v309
      %v374 = vld [vmem:[%s1] sm:$0x3]
      %v376 = vlaneseq
      %v377 = vshrl.u32 %v376, 7
      %v378 = vsub.s32 0, %v377
      %v379 = vrot.slane %v374, %v378
      %v380 = vlaneseq
      %v381 = vshrl.u32 %v380, 7
      %v382 = vsub.s32 1, %v381
      %v383 = vrot.slane %v374, %v382
      %v386 = vmul.f32 %v342, %v379
      %v387 = vmul.f32 %v343, %v383
      %v388 = vmul.f32 %v344, %v379
      %v389 = vmul.f32 %v345, %v383
      %v390 = vmul.f32 %v346, %v379
      %v391 = vmul.f32 %v347, %v383
      %v392 = vmul.f32 %v348, %v379
      %v393 = vmul.f32 %v349, %v383
      %v394 = vmul.f32 %v350, %v379
      %v395 = vmul.f32 %v351, %v383
      %v396 = vmul.f32 %v352, %v379
      %v397 = vmul.f32 %v353, %v383
      %v398 = vmul.f32 %v354, %v379
      %v399 = vmul.f32 %v355, %v383
      %v400 = vmul.f32 %v356, %v379
      %v401 = vmul.f32 %v357, %v383
      %v402 = vmul.f32 %v358, %v379
      %v403 = vmul.f32 %v359, %v383
      %v404 = vmul.f32 %v360, %v379
      %v405 = vmul.f32 %v361, %v383
      %v406 = vmul.f32 %v362, %v379
      %v407 = vmul.f32 %v363, %v383
      %v408 = vmul.f32 %v364, %v379
      %v409 = vmul.f32 %v365, %v383
      %v410 = vmul.f32 %v366, %v379
      %v411 = vmul.f32 %v367, %v383
      %v412 = vmul.f32 %v368, %v379
      %v413 = vmul.f32 %v369, %v383
      %v414 = vmul.f32 %v370, %v379
      %v415 = vmul.f32 %v371, %v383
      %v416 = vmul.f32 %v372, %v379
      %v417 = vmul.f32 %v373, %v383
      %v418 = vld [vmem:[%s2] sm:$0x3]
      %v420 = vlaneseq
      %v421 = vshrl.u32 %v420, 7
      %v422 = vsub.s32 0, %v421
      %v423 = vrot.slane %v418, %v422
      %v424 = vlaneseq
      %v425 = vshrl.u32 %v424, 7
      %v426 = vsub.s32 1, %v425
      %v427 = vrot.slane %v418, %v426
      %v430 = vadd.f32 %v386, %v423
      %v431 = vadd.f32 %v387, %v427
      %v432 = vadd.f32 %v388, %v423
      %v433 = vadd.f32 %v389, %v427
      %v434 = vadd.f32 %v390, %v423
      %v435 = vadd.f32 %v391, %v427
      %v436 = vadd.f32 %v392, %v423
      %v437 = vadd.f32 %v393, %v427
      %v438 = vadd.f32 %v394, %v423
      %v439 = vadd.f32 %v395, %v427
      %v440 = vadd.f32 %v396, %v423
      %v441 = vadd.f32 %v397, %v427
      %v442 = vadd.f32 %v398, %v423
      %v443 = vadd.f32 %v399, %v427
      %v444 = vadd.f32 %v400, %v423
      %v445 = vadd.f32 %v401, %v427
      %v446 = vadd.f32 %v402, %v423
      %v447 = vadd.f32 %v403, %v427
      %v448 = vadd.f32 %v404, %v423
      %v449 = vadd.f32 %v405, %v427
      %v450 = vadd.f32 %v406, %v423
      %v451 = vadd.f32 %v407, %v427
      %v452 = vadd.f32 %v408, %v423
      %v453 = vadd.f32 %v409, %v427
      %v454 = vadd.f32 %v410, %v423
      %v455 = vadd.f32 %v411, %v427
      %v456 = vadd.f32 %v412, %v423
      %v457 = vadd.f32 %v413, %v427
      %v458 = vadd.f32 %v414, %v423
      %v459 = vadd.f32 %v415, %v427
      %v460 = vadd.f32 %v416, %v423
      %v461 = vadd.f32 %v417, %v427
      %v462 = vpack.c.bf16 %v432, %v430
      %v463 = vpack.c.bf16 %v433, %v431
      %v464 = vpack.c.bf16 %v436, %v434
      %v465 = vpack.c.bf16 %v437, %v435
      %v466 = vpack.c.bf16 %v440, %v438
      %v467 = vpack.c.bf16 %v441, %v439
      %v468 = vpack.c.bf16 %v444, %v442
      %v469 = vpack.c.bf16 %v445, %v443
      %v470 = vpack.c.bf16 %v448, %v446
      %v471 = vpack.c.bf16 %v449, %v447
      %v472 = vpack.c.bf16 %v452, %v450
      %v473 = vpack.c.bf16 %v453, %v451
      %v474 = vpack.c.bf16 %v456, %v454
      %v475 = vpack.c.bf16 %v457, %v455
      %v476 = vpack.c.bf16 %v460, %v458
      %v477 = vpack.c.bf16 %v461, %v459
      %v494 = vunpack.c.l.b16 %v462
      %v495 = vunpack.c.l.b16 %v463
      %v496 = vunpack.c.h.b16 %v462
      %v497 = vunpack.c.h.b16 %v463
      %v498 = vunpack.c.l.b16 %v464
      %v499 = vunpack.c.l.b16 %v465
      %v500 = vunpack.c.h.b16 %v464
      %v501 = vunpack.c.h.b16 %v465
      %v502 = vunpack.c.l.b16 %v466
      %v503 = vunpack.c.l.b16 %v467
      %v504 = vunpack.c.h.b16 %v466
      %v505 = vunpack.c.h.b16 %v467
      %v506 = vunpack.c.l.b16 %v468
      %v507 = vunpack.c.l.b16 %v469
      %v508 = vunpack.c.h.b16 %v468
      %v509 = vunpack.c.h.b16 %v469
      %v510 = vunpack.c.l.b16 %v470
      %v511 = vunpack.c.l.b16 %v471
      %v512 = vunpack.c.h.b16 %v470
      %v513 = vunpack.c.h.b16 %v471
      %v514 = vunpack.c.l.b16 %v472
      %v515 = vunpack.c.l.b16 %v473
      %v516 = vunpack.c.h.b16 %v472
      %v517 = vunpack.c.h.b16 %v473
      %v518 = vunpack.c.l.b16 %v474
      %v519 = vunpack.c.l.b16 %v475
      %v520 = vunpack.c.h.b16 %v474
      %v521 = vunpack.c.h.b16 %v475
      %v522 = vunpack.c.l.b16 %v476
      %v523 = vunpack.c.l.b16 %v477
      %v524 = vunpack.c.h.b16 %v476
      %v525 = vunpack.c.h.b16 %v477
      %v526 = vpack.c.b16 %v495, %v494
      %v527 = vpack.c.b16 %v497, %v496
      %v528 = vpack.c.b16 %v499, %v498
      %v529 = vpack.c.b16 %v501, %v500
      %v530 = vpack.c.b16 %v503, %v502
      %v531 = vpack.c.b16 %v505, %v504
      %v532 = vpack.c.b16 %v507, %v506
      %v533 = vpack.c.b16 %v509, %v508
      %v534 = vpack.c.b16 %v511, %v510
      %v535 = vpack.c.b16 %v513, %v512
      %v536 = vpack.c.b16 %v515, %v514
      %v537 = vpack.c.b16 %v517, %v516
      %v538 = vpack.c.b16 %v519, %v518
      %v539 = vpack.c.b16 %v521, %v520
      %v540 = vpack.c.b16 %v523, %v522
      %v541 = vpack.c.b16 %v525, %v524
      %558 = vst [vmem:[#allocation2] sm:$0xff] %v526
      %559 = vst [vmem:[#allocation2 + $0x8] sm:$0xff] %v527
      %560 = vst [vmem:[#allocation2 + $0x10] sm:$0xff] %v528
      %561 = vst [vmem:[#allocation2 + $0x18] sm:$0xff] %v529
      %562 = vst [vmem:[#allocation2 + $0x20] sm:$0xff] %v530
      %563 = vst [vmem:[#allocation2 + $0x28] sm:$0xff] %v531
      %564 = vst [vmem:[#allocation2 + $0x30] sm:$0xff] %v532
      %565 = vst [vmem:[#allocation2 + $0x38] sm:$0xff] %v533
      %566 = vst [vmem:[#allocation2 + $0x40] sm:$0xff] %v534
      %567 = vst [vmem:[#allocation2 + $0x48] sm:$0xff] %v535
      %568 = vst [vmem:[#allocation2 + $0x50] sm:$0xff] %v536
      %569 = vst [vmem:[#allocation2 + $0x58] sm:$0xff] %v537
      %570 = vst [vmem:[#allocation2 + $0x60] sm:$0xff] %v538
      %571 = vst [vmem:[#allocation2 + $0x68] sm:$0xff] %v539
      %572 = vst [vmem:[#allocation2 + $0x70] sm:$0xff] %v540
      %573 = vst [vmem:[#allocation2 + $0x78] sm:$0xff] %v541
    $region33: #{prenorm_residual.1} parent=1 // pred_fallthru
      _
    %v574 = vld [vmem:[#allocation2] sm:$0xff]
    %v575 = vld [vmem:[#allocation2 + $0x8] sm:$0xff]
    %v576 = vld [vmem:[#allocation2 + $0x10] sm:$0xff]
    %v577 = vld [vmem:[#allocation2 + $0x18] sm:$0xff]
    %v578 = vld [vmem:[#allocation2 + $0x20] sm:$0xff]
    %v579 = vld [vmem:[#allocation2 + $0x28] sm:$0xff]
    %v580 = vld [vmem:[#allocation2 + $0x30] sm:$0xff]
    %v581 = vld [vmem:[#allocation2 + $0x38] sm:$0xff]
    %v582 = vld [vmem:[#allocation2 + $0x40] sm:$0xff]
    %v583 = vld [vmem:[#allocation2 + $0x48] sm:$0xff]
    %v584 = vld [vmem:[#allocation2 + $0x50] sm:$0xff]
    %v585 = vld [vmem:[#allocation2 + $0x58] sm:$0xff]
    %v586 = vld [vmem:[#allocation2 + $0x60] sm:$0xff]
    %v587 = vld [vmem:[#allocation2 + $0x68] sm:$0xff]
    %v588 = vld [vmem:[#allocation2 + $0x70] sm:$0xff]
    %v589 = vld [vmem:[#allocation2 + $0x78] sm:$0xff]
    %v590 = vld [vmem:[#allocation6] sm:$0xff]
    %v591 = vld [vmem:[#allocation6 + $0x8] sm:$0xff]
    %v592 = vld [vmem:[#allocation6 + $0x10] sm:$0xff]
    %v593 = vld [vmem:[#allocation6 + $0x18] sm:$0xff]
    %v594 = vld [vmem:[#allocation6 + $0x20] sm:$0xff]
    %v595 = vld [vmem:[#allocation6 + $0x28] sm:$0xff]
    %v596 = vld [vmem:[#allocation6 + $0x30] sm:$0xff]
    %v597 = vld [vmem:[#allocation6 + $0x38] sm:$0xff]
    %v598 = vld [vmem:[#allocation6 + $0x40] sm:$0xff]
    %v599 = vld [vmem:[#allocation6 + $0x48] sm:$0xff]
    %v600 = vld [vmem:[#allocation6 + $0x50] sm:$0xff]
    %v601 = vld [vmem:[#allocation6 + $0x58] sm:$0xff]
    %v602 = vld [vmem:[#allocation6 + $0x60] sm:$0xff]
    %v603 = vld [vmem:[#allocation6 + $0x68] sm:$0xff]
    %v604 = vld [vmem:[#allocation6 + $0x70] sm:$0xff]
    %v605 = vld [vmem:[#allocation6 + $0x78] sm:$0xff]
    %v606 = vld [vmem:[#allocation6 + $0x80] sm:$0xff]
    %v607 = vld [vmem:[#allocation6 + $0x88] sm:$0xff]
    %v608 = vld [vmem:[#allocation6 + $0x90] sm:$0xff]
    %v609 = vld [vmem:[#allocation6 + $0x98] sm:$0xff]
    %v610 = vld [vmem:[#allocation6 + $0xa0] sm:$0xff]
    %v611 = vld [vmem:[#allocation6 + $0xa8] sm:$0xff]
    %v612 = vld [vmem:[#allocation6 + $0xb0] sm:$0xff]
    %v613 = vld [vmem:[#allocation6 + $0xb8] sm:$0xff]
    %v614 = vld [vmem:[#allocation6 + $0xc0] sm:$0xff]
    %v615 = vld [vmem:[#allocation6 + $0xc8] sm:$0xff]
    %v616 = vld [vmem:[#allocation6 + $0xd0] sm:$0xff]
    %v617 = vld [vmem:[#allocation6 + $0xd8] sm:$0xff]
    %v618 = vld [vmem:[#allocation6 + $0xe0] sm:$0xff]
    %v619 = vld [vmem:[#allocation6 + $0xe8] sm:$0xff]
    %v620 = vld [vmem:[#allocation6 + $0xf0] sm:$0xff]
    %v621 = vld [vmem:[#allocation6 + $0xf8] sm:$0xff]
    %s622 = smul.u32 0, 256
    %s623 = sshra.s32 %s622, 7
    %s624 = sand.u32 %s622, 127
    %s625 = smul.addr %s623, 8
    %s626 = scalar_lea.vmem [#allocation3], %s625
    %v627 = vld [vmem:[%s626] sm:$0xff]
    %v628 = vld [vmem:[%s626 + $0x8] sm:$0xff]
    %v629 = vld [vmem:[%s626 + $0x10] sm:$0xff]
    %v630 = vld [vmem:[%s626 + $0x18] sm:$0xff]
    %v631 = vld [vmem:[%s626 + $0x20] sm:$0xff]
    %v632 = vld [vmem:[%s626 + $0x28] sm:$0xff]
    %v633 = vld [vmem:[%s626 + $0x30] sm:$0xff]
    %v634 = vld [vmem:[%s626 + $0x38] sm:$0xff]
    %v635 = vld [vmem:[%s626 + $0x40] sm:$0xff]
    %v636 = vld [vmem:[%s626 + $0x48] sm:$0xff]
    %v637 = vld [vmem:[%s626 + $0x50] sm:$0xff]
    %v638 = vld [vmem:[%s626 + $0x58] sm:$0xff]
    %v639 = vld [vmem:[%s626 + $0x60] sm:$0xff]
    %v640 = vld [vmem:[%s626 + $0x68] sm:$0xff]
    %v641 = vld [vmem:[%s626 + $0x70] sm:$0xff]
    %v642 = vld [vmem:[%s626 + $0x78] sm:$0xff]
    %v643 = vld [vmem:[%s626 + $0x80] sm:$0xff]
    %v644 = vld [vmem:[%s626 + $0x88] sm:$0xff]
    %v645 = vld [vmem:[%s626 + $0x90] sm:$0xff]
    %v646 = vld [vmem:[%s626 + $0x98] sm:$0xff]
    %v647 = vld [vmem:[%s626 + $0xa0] sm:$0xff]
    %v648 = vld [vmem:[%s626 + $0xa8] sm:$0xff]
    %v649 = vld [vmem:[%s626 + $0xb0] sm:$0xff]
    %v650 = vld [vmem:[%s626 + $0xb8] sm:$0xff]
    %v651 = vld [vmem:[%s626 + $0xc0] sm:$0xff]
    %v652 = vld [vmem:[%s626 + $0xc8] sm:$0xff]
    %v653 = vld [vmem:[%s626 + $0xd0] sm:$0xff]
    %v654 = vld [vmem:[%s626 + $0xd8] sm:$0xff]
    %v655 = vld [vmem:[%s626 + $0xe0] sm:$0xff]
    %v656 = vld [vmem:[%s626 + $0xe8] sm:$0xff]
    %v657 = vld [vmem:[%s626 + $0xf0] sm:$0xff]
    %v658 = vld [vmem:[%s626 + $0xf8] sm:$0xff]
    %v659 = vld [vmem:[%s4] sm:$0x3]
    %v661 = vlaneseq
    %v662 = vshrl.u32 %v661, 7
    %v663 = vsub.s32 0, %v662
    %v664 = vrot.slane %v659, %v663
    %v665 = vlaneseq
    %v666 = vshrl.u32 %v665, 7
    %v667 = vsub.s32 1, %v666
    %v668 = vrot.slane %v659, %v667
    %v687 = vunpack.c.l.b16 %v574
    %v688 = vunpack.c.h.b16 %v574
    %v689 = vunpack.c.l.b16 %v575
    %v690 = vunpack.c.h.b16 %v575
    %v691 = vunpack.c.l.b16 %v576
    %v692 = vunpack.c.h.b16 %v576
    %v693 = vunpack.c.l.b16 %v577
    %v694 = vunpack.c.h.b16 %v577
    %v695 = vunpack.c.l.b16 %v578
    %v696 = vunpack.c.h.b16 %v578
    %v697 = vunpack.c.l.b16 %v579
    %v698 = vunpack.c.h.b16 %v579
    %v699 = vunpack.c.l.b16 %v580
    %v700 = vunpack.c.h.b16 %v580
    %v701 = vunpack.c.l.b16 %v581
    %v702 = vunpack.c.h.b16 %v581
    %v703 = vunpack.c.l.b16 %v582
    %v704 = vunpack.c.h.b16 %v582
    %v705 = vunpack.c.l.b16 %v583
    %v706 = vunpack.c.h.b16 %v583
    %v707 = vunpack.c.l.b16 %v584
    %v708 = vunpack.c.h.b16 %v584
    %v709 = vunpack.c.l.b16 %v585
    %v710 = vunpack.c.h.b16 %v585
    %v711 = vunpack.c.l.b16 %v586
    %v712 = vunpack.c.h.b16 %v586
    %v713 = vunpack.c.l.b16 %v587
    %v714 = vunpack.c.h.b16 %v587
    %v715 = vunpack.c.l.b16 %v588
    %v716 = vunpack.c.h.b16 %v588
    %v717 = vunpack.c.l.b16 %v589
    %v718 = vunpack.c.h.b16 %v589
    %v719 = vpack.c.b16 %v689, %v687
    %v720 = vpack.c.b16 %v690, %v688
    %v721 = vpack.c.b16 %v693, %v691
    %v722 = vpack.c.b16 %v694, %v692
    %v723 = vpack.c.b16 %v697, %v695
    %v724 = vpack.c.b16 %v698, %v696
    %v725 = vpack.c.b16 %v701, %v699
    %v726 = vpack.c.b16 %v702, %v700
    %v727 = vpack.c.b16 %v705, %v703
    %v728 = vpack.c.b16 %v706, %v704
    %v729 = vpack.c.b16 %v709, %v707
    %v730 = vpack.c.b16 %v710, %v708
    %v731 = vpack.c.b16 %v713, %v711
    %v732 = vpack.c.b16 %v714, %v712
    %v733 = vpack.c.b16 %v717, %v715
    %v734 = vpack.c.b16 %v718, %v716
    %v783 = vunpack.c.l.b16 %v590
    %v784 = vunpack.c.h.b16 %v590
    %v785 = vunpack.c.l.b16 %v591
    %v786 = vunpack.c.h.b16 %v591
    %v787 = vunpack.c.l.b16 %v592
    %v788 = vunpack.c.h.b16 %v592
    %v789 = vunpack.c.l.b16 %v593
    %v790 = vunpack.c.h.b16 %v593
    %v791 = vunpack.c.l.b16 %v594
    %v792 = vunpack.c.h.b16 %v594
    %v793 = vunpack.c.l.b16 %v595
    %v794 = vunpack.c.h.b16 %v595
    %v795 = vunpack.c.l.b16 %v596
    %v796 = vunpack.c.h.b16 %v596
    %v797 = vunpack.c.l.b16 %v597
    %v798 = vunpack.c.h.b16 %v597
    %v799 = vunpack.c.l.b16 %v598
    %v800 = vunpack.c.h.b16 %v598
    %v801 = vunpack.c.l.b16 %v599
    %v802 = vunpack.c.h.b16 %v599
    %v803 = vunpack.c.l.b16 %v600
    %v804 = vunpack.c.h.b16 %v600
    %v805 = vunpack.c.l.b16 %v601
    %v806 = vunpack.c.h.b16 %v601
    %v807 = vunpack.c.l.b16 %v602
    %v808 = vunpack.c.h.b16 %v602
    %v809 = vunpack.c.l.b16 %v603
    %v810 = vunpack.c.h.b16 %v603
    %v811 = vunpack.c.l.b16 %v604
    %v812 = vunpack.c.h.b16 %v604
    %v813 = vunpack.c.l.b16 %v605
    %v814 = vunpack.c.h.b16 %v605
    %v815 = vunpack.c.l.b16 %v606
    %v816 = vunpack.c.h.b16 %v606
    %v817 = vunpack.c.l.b16 %v607
    %v818 = vunpack.c.h.b16 %v607
    %v819 = vunpack.c.l.b16 %v608
    %v820 = vunpack.c.h.b16 %v608
    %v821 = vunpack.c.l.b16 %v609
    %v822 = vunpack.c.h.b16 %v609
    %v823 = vunpack.c.l.b16 %v610
    %v824 = vunpack.c.h.b16 %v610
    %v825 = vunpack.c.l.b16 %v611
    %v826 = vunpack.c.h.b16 %v611
    %v827 = vunpack.c.l.b16 %v612
    %v828 = vunpack.c.h.b16 %v612
    %v829 = vunpack.c.l.b16 %v613
    %v830 = vunpack.c.h.b16 %v613
    %v831 = vunpack.c.l.b16 %v614
    %v832 = vunpack.c.h.b16 %v614
    %v833 = vunpack.c.l.b16 %v615
    %v834 = vunpack.c.h.b16 %v615
    %v835 = vunpack.c.l.b16 %v616
    %v836 = vunpack.c.h.b16 %v616
    %v837 = vunpack.c.l.b16 %v617
    %v838 = vunpack.c.h.b16 %v617
    %v839 = vunpack.c.l.b16 %v618
    %v840 = vunpack.c.h.b16 %v618
    %v841 = vunpack.c.l.b16 %v619
    %v842 = vunpack.c.h.b16 %v619
    %v843 = vunpack.c.l.b16 %v620
    %v844 = vunpack.c.h.b16 %v620
    %v845 = vunpack.c.l.b16 %v621
    %v846 = vunpack.c.h.b16 %v621
    %v847 = vpack.c.b16 %v785, %v783
    %v848 = vpack.c.b16 %v786, %v784
    %v849 = vpack.c.b16 %v789, %v787
    %v850 = vpack.c.b16 %v790, %v788
    %v851 = vpack.c.b16 %v793, %v791
    %v852 = vpack.c.b16 %v794, %v792
    %v853 = vpack.c.b16 %v797, %v795
    %v854 = vpack.c.b16 %v798, %v796
    %v855 = vpack.c.b16 %v801, %v799
    %v856 = vpack.c.b16 %v802, %v800
    %v857 = vpack.c.b16 %v805, %v803
    %v858 = vpack.c.b16 %v806, %v804
    %v859 = vpack.c.b16 %v809, %v807
    %v860 = vpack.c.b16 %v810, %v808
    %v861 = vpack.c.b16 %v813, %v811
    %v862 = vpack.c.b16 %v814, %v812
    %v863 = vpack.c.b16 %v817, %v815
    %v864 = vpack.c.b16 %v818, %v816
    %v865 = vpack.c.b16 %v821, %v819
    %v866 = vpack.c.b16 %v822, %v820
    %v867 = vpack.c.b16 %v825, %v823
    %v868 = vpack.c.b16 %v826, %v824
    %v869 = vpack.c.b16 %v829, %v827
    %v870 = vpack.c.b16 %v830, %v828
    %v871 = vpack.c.b16 %v833, %v831
    %v872 = vpack.c.b16 %v834, %v832
    %v873 = vpack.c.b16 %v837, %v835
    %v874 = vpack.c.b16 %v838, %v836
    %v875 = vpack.c.b16 %v841, %v839
    %v876 = vpack.c.b16 %v842, %v840
    %v877 = vpack.c.b16 %v845, %v843
    %v878 = vpack.c.b16 %v846, %v844
    %911 = vmatprep.subr.bf16.mxu0 %v862
    %912 = vmatpush1.bf16.msra.mxu0 %v861
    %913 = vmatprep.subr.bf16.mxu0 %v860
    %914 = vmatpush1.bf16.msra.mxu0 %v859
    %915 = vmatprep.subr.bf16.mxu0 %v858
    %916 = vmatpush1.bf16.msra.mxu0 %v857
    %917 = vmatprep.subr.bf16.mxu0 %v856
    %918 = vmatpush1.bf16.msra.mxu0 %v855
    %919 = vmatprep.subr.bf16.mxu0 %v854
    %920 = vmatpush1.bf16.msra.mxu0 %v853
    %921 = vmatprep.subr.bf16.mxu0 %v852
    %922 = vmatpush1.bf16.msra.mxu0 %v851
    %923 = vmatprep.subr.bf16.mxu0 %v850
    %924 = vmatpush1.bf16.msra.mxu0 %v849
    %925 = vmatprep.subr.bf16.mxu0 %v848
    %926 = vmatpush1.bf16.msra.mxu0 %v847
    %927 = vmatprep.subr.bf16.mxu0 %v878
    %928 = vmatpush2.bf16.msra.mxu0 %v877
    %929 = vmatprep.subr.bf16.mxu0 %v876
    %930 = vmatpush2.bf16.msra.mxu0 %v875
    %931 = vmatprep.subr.bf16.mxu0 %v874
    %932 = vmatpush2.bf16.msra.mxu0 %v873
    %933 = vmatprep.subr.bf16.mxu0 %v872
    %934 = vmatpush2.bf16.msra.mxu0 %v871
    %935 = vmatprep.subr.bf16.mxu0 %v870
    %936 = vmatpush2.bf16.msra.mxu0 %v869
    %937 = vmatprep.subr.bf16.mxu0 %v868
    %938 = vmatpush2.bf16.msra.mxu0 %v867
    %939 = vmatprep.subr.bf16.mxu0 %v866
    %940 = vmatpush2.bf16.msra.mxu0 %v865
    %941 = vmatprep.subr.bf16.mxu0 %v864
    %942 = vmatpush2.bf16.msra.mxu0 %v863
    %943 = vmatprep.mubr.bf16.mxu0 %v720
    %944 = vmatmul.mubr.bf16.gmra.mxu0 %v719
    %v945 = vpop.f32.mrf.mxu0
    %v946 = vadd.f32 %v664, %v945
    %v947 = vpop.f32.mrf.mxu0
    %v948 = vadd.f32 %v668, %v947
    %v949 = vpop.f32.mrf.mxu0
    %v950 = vadd.f32 %v664, %v949
    %v951 = vpop.f32.mrf.mxu0
    %v952 = vadd.f32 %v668, %v951
    %953 = vmatprep.mubr.bf16.mxu0 %v722
    %954 = vmatmul.mubr.bf16.gmra.mxu0 %v721
    %v955 = vpop.f32.mrf.mxu0
    %v956 = vadd.f32 %v664, %v955
    %v957 = vpop.f32.mrf.mxu0
    %v958 = vadd.f32 %v668, %v957
    %v959 = vpop.f32.mrf.mxu0
    %v960 = vadd.f32 %v664, %v959
    %v961 = vpop.f32.mrf.mxu0
    %v962 = vadd.f32 %v668, %v961
    %963 = vmatprep.mubr.bf16.mxu0 %v724
    %964 = vmatmul.mubr.bf16.gmra.mxu0 %v723
    %v965 = vpop.f32.mrf.mxu0
    %v966 = vadd.f32 %v664, %v965
    %v967 = vpop.f32.mrf.mxu0
    %v968 = vadd.f32 %v668, %v967
    %v969 = vpop.f32.mrf.mxu0
    %v970 = vadd.f32 %v664, %v969
    %v971 = vpop.f32.mrf.mxu0
    %v972 = vadd.f32 %v668, %v971
    %973 = vmatprep.mubr.bf16.mxu0 %v726
    %974 = vmatmul.mubr.bf16.gmra.mxu0 %v725
    %v975 = vpop.f32.mrf.mxu0
    %v976 = vadd.f32 %v664, %v975
    %v977 = vpop.f32.mrf.mxu0
    %v978 = vadd.f32 %v668, %v977
    %v979 = vpop.f32.mrf.mxu0
    %v980 = vadd.f32 %v664, %v979
    %v981 = vpop.f32.mrf.mxu0
    %v982 = vadd.f32 %v668, %v981
    %983 = vmatprep.mubr.bf16.mxu0 %v728
    %984 = vmatmul.mubr.bf16.gmra.mxu0 %v727
    %v985 = vpop.f32.mrf.mxu0
    %v986 = vadd.f32 %v664, %v985
    %v987 = vpop.f32.mrf.mxu0
    %v988 = vadd.f32 %v668, %v987
    %v989 = vpop.f32.mrf.mxu0
    %v990 = vadd.f32 %v664, %v989
    %v991 = vpop.f32.mrf.mxu0
    %v992 = vadd.f32 %v668, %v991
    %993 = vmatprep.mubr.bf16.mxu0 %v730
    %994 = vmatmul.mubr.bf16.gmra.mxu0 %v729
    %v995 = vpop.f32.mrf.mxu0
    %v996 = vadd.f32 %v664, %v995
    %v997 = vpop.f32.mrf.mxu0
    %v998 = vadd.f32 %v668, %v997
    %v999 = vpop.f32.mrf.mxu0
    %v1000 = vadd.f32 %v664, %v999
    %v1001 = vpop.f32.mrf.mxu0
    %v1002 = vadd.f32 %v668, %v1001
    %1003 = vmatprep.mubr.bf16.mxu0 %v732
    %1004 = vmatmul.mubr.bf16.gmra.mxu0 %v731
    %v1005 = vpop.f32.mrf.mxu0
    %v1006 = vadd.f32 %v664, %v1005
    %v1007 = vpop.f32.mrf.mxu0
    %v1008 = vadd.f32 %v668, %v1007
    %v1009 = vpop.f32.mrf.mxu0
    %v1010 = vadd.f32 %v664, %v1009
    %v1011 = vpop.f32.mrf.mxu0
    %v1012 = vadd.f32 %v668, %v1011
    %1013 = vmatprep.mubr.bf16.mxu0 %v734
    %1014 = vmatmul.mubr.bf16.gmra.mxu0 %v733
    %v1015 = vpop.f32.mrf.mxu0
    %v1016 = vadd.f32 %v664, %v1015
    %v1017 = vpop.f32.mrf.mxu0
    %v1018 = vadd.f32 %v668, %v1017
    %v1019 = vpop.f32.mrf.mxu0
    %v1020 = vadd.f32 %v664, %v1019
    %v1021 = vpop.f32.mrf.mxu0
    %v1022 = vadd.f32 %v668, %v1021
    %1023 = vdwg.mxu0
    %v1024 = vadd.f32 %v946, %v627
    %v1025 = vadd.f32 %v948, %v628
    %v1026 = vadd.f32 %v950, %v629
    %v1027 = vadd.f32 %v952, %v630
    %v1028 = vadd.f32 %v956, %v631
    %v1029 = vadd.f32 %v958, %v632
    %v1030 = vadd.f32 %v960, %v633
    %v1031 = vadd.f32 %v962, %v634
    %v1032 = vadd.f32 %v966, %v635
    %v1033 = vadd.f32 %v968, %v636
    %v1034 = vadd.f32 %v970, %v637
    %v1035 = vadd.f32 %v972, %v638
    %v1036 = vadd.f32 %v976, %v639
    %v1037 = vadd.f32 %v978, %v640
    %v1038 = vadd.f32 %v980, %v641
    %v1039 = vadd.f32 %v982, %v642
    %v1040 = vadd.f32 %v986, %v643
    %v1041 = vadd.f32 %v988, %v644
    %v1042 = vadd.f32 %v990, %v645
    %v1043 = vadd.f32 %v992, %v646
    %v1044 = vadd.f32 %v996, %v647
    %v1045 = vadd.f32 %v998, %v648
    %v1046 = vadd.f32 %v1000, %v649
    %v1047 = vadd.f32 %v1002, %v650
    %v1048 = vadd.f32 %v1006, %v651
    %v1049 = vadd.f32 %v1008, %v652
    %v1050 = vadd.f32 %v1010, %v653
    %v1051 = vadd.f32 %v1012, %v654
    %v1052 = vadd.f32 %v1016, %v655
    %v1053 = vadd.f32 %v1018, %v656
    %v1054 = vadd.f32 %v1020, %v657
    %v1055 = vadd.f32 %v1022, %v658
    %1056 = vst [vmem:[#allocation8] sm:$0xff] %v1024
    %1057 = vst [vmem:[#allocation8 + $0x8] sm:$0xff] %v1025
    %1058 = vst [vmem:[#allocation8 + $0x10] sm:$0xff] %v1026
    %1059 = vst [vmem:[#allocation8 + $0x18] sm:$0xff] %v1027
    %1060 = vst [vmem:[#allocation8 + $0x20] sm:$0xff] %v1028
    %1061 = vst [vmem:[#allocation8 + $0x28] sm:$0xff] %v1029
    %1062 = vst [vmem:[#allocation8 + $0x30] sm:$0xff] %v1030
    %1063 = vst [vmem:[#allocation8 + $0x38] sm:$0xff] %v1031
    %1064 = vst [vmem:[#allocation8 + $0x40] sm:$0xff] %v1032
    %1065 = vst [vmem:[#allocation8 + $0x48] sm:$0xff] %v1033
    %1066 = vst [vmem:[#allocation8 + $0x50] sm:$0xff] %v1034
    %1067 = vst [vmem:[#allocation8 + $0x58] sm:$0xff] %v1035
    %1068 = vst [vmem:[#allocation8 + $0x60] sm:$0xff] %v1036
    %1069 = vst [vmem:[#allocation8 + $0x68] sm:$0xff] %v1037
    %1070 = vst [vmem:[#allocation8 + $0x70] sm:$0xff] %v1038
    %1071 = vst [vmem:[#allocation8 + $0x78] sm:$0xff] %v1039
    %1072 = vst [vmem:[#allocation8 + $0x80] sm:$0xff] %v1040
    %1073 = vst [vmem:[#allocation8 + $0x88] sm:$0xff] %v1041
    %1074 = vst [vmem:[#allocation8 + $0x90] sm:$0xff] %v1042
    %1075 = vst [vmem:[#allocation8 + $0x98] sm:$0xff] %v1043
    %1076 = vst [vmem:[#allocation8 + $0xa0] sm:$0xff] %v1044
    %1077 = vst [vmem:[#allocation8 + $0xa8] sm:$0xff] %v1045
    %1078 = vst [vmem:[#allocation8 + $0xb0] sm:$0xff] %v1046
    %1079 = vst [vmem:[#allocation8 + $0xb8] sm:$0xff] %v1047
    %1080 = vst [vmem:[#allocation8 + $0xc0] sm:$0xff] %v1048
    %1081 = vst [vmem:[#allocation8 + $0xc8] sm:$0xff] %v1049
    %1082 = vst [vmem:[#allocation8 + $0xd0] sm:$0xff] %v1050
    %1083 = vst [vmem:[#allocation8 + $0xd8] sm:$0xff] %v1051
    %1084 = vst [vmem:[#allocation8 + $0xe0] sm:$0xff] %v1052
    %1085 = vst [vmem:[#allocation8 + $0xe8] sm:$0xff] %v1053
    %1086 = vst [vmem:[#allocation8 + $0xf0] sm:$0xff] %v1054
    %1087 = vst [vmem:[#allocation8 + $0xf8] sm:$0xff] %v1055
    // Predicated region
    $region34: #{prenorm_residual.1} parent=1 // pred_check
      _
    $region35: #{prenorm_residual.1} parent=1 // pred_check_branch
      %1089 = sbr.rel (0) target = $region37
    $region36: #{prenorm_residual.1} parent=1 // pred_region
      %s1091 = ssub.s32 4096, 4096
      %1092 = vsyncadd [#allocation5], %s1091
      %s1093 = sshll.u32 [#allocation8], 4
      %s1094 = int_to_ptr.vmem [resolvable:$true] %s1093
      %1099 = dma.vmem_to_hbm [thread:$0]  %s1094, 4096, %s5, [#allocation5], 256, 256, 16
    $region37: #{prenorm_residual.1} parent=1 // pred_fallthru
      _
    // Predicated region
    $region38: #{prenorm_residual.1} parent=1 // pred_check
      _
    $region39: #{prenorm_residual.1} parent=1 // pred_check_branch
      %1101 = sbr.rel (0) target = $region41
    $region40: #{prenorm_residual.1} parent=1 // pred_region
      %1102 = dma.done [#allocation5], 4096
    $region41: #{prenorm_residual.1} parent=1 // pred_fallthru
      _
    %1103 = vsyncpa [#allocation4], 1
    %1104 = vsyncpa [#allocation7], 1
    %1105 = vsyncpa [#allocation5], 1

</llo_original>
